<compile_context>
chip_gen: v6e
topology: v6e:2x2x1
jax: 0.10.0
libtpu: 0.0.40
codegen_flags: <defaults>
</compile_context>

<pallas_src>
import jax
import jax.numpy as jnp
from jax.experimental import pallas as pl
from jax.experimental.pallas import tpu as pltpu

LEAKY_SLOPE = 0.1
BN_EPS = 1e-5


def _leaky(x):
    # slope in (0,1) -> leaky_relu(x) == max(x, slope*x): one mul + one max.
    return jnp.maximum(x, LEAKY_SLOPE * x)


def simple_fusion_kernel(vis_ref, wconv_ref, cvec_ref, lpf_ref, out_ref):
    """One grid step handles a (Bt, tHW) tile of the (batch, spatial) space.

    vis_ref   : (Bt, tHW, Cin)   bf16 visual tile, channels-last
    wconv_ref : (Cin, Cproj)     bf16 1x1-conv weight with conv-BN scale folded in
    cvec_ref  : (2, Cproj)       f32 rows: [conv_bn_shift, fus_bn_shift]
    lpf_ref   : (Bt, 1, Cproj)   f32 precomputed leaky(lang_proj) * fus_bn_scale
    out_ref   : (Bt, tHW, Cproj) f32
    """
    Bt, tHW, Cin = vis_ref.shape
    Cproj = out_ref.shape[-1]

    # --- mapping_visu: 1x1 conv as a single matmul with M = Bt*tHW rows ------
    v = vis_ref[...].reshape(Bt * tHW, Cin)                       # layout-preserving
    vp = jnp.dot(v, wconv_ref[...], preferred_element_type=jnp.float32)
    vp = _leaky(vp + cvec_ref[0:1, :])                            # Conv-BN2d + LeakyReLU

    # --- fusion: broadcast multiply by (lang_proj * fus_scale) + shift + leaky
    vp = vp.reshape(Bt, tHW, Cproj)
    f = vp * lpf_ref[...] + cvec_ref[1:2, :]
    out_ref[...] = _leaky(f)


def _pick_tiles(B, HW, max_rows=2048):
    """Pick (Bt, tHW) so the matmul gets M = Bt*tHW rows (capped for VMEM)."""
    if B * HW <= max_rows and HW % 16 == 0:
        return B, HW                      # demo: Bt=2, tHW=64 -> M=128, grid (1,1)
    if HW <= max_rows:
        Bt = 1
        if HW % 16 == 0:                  # only merge batch rows when layout-safe
            for d in range(1, B + 1):
                if B % d == 0 and d * HW <= max_rows:
                    Bt = d
        return Bt, HW
    # Large feature maps (e.g. v7x with 64 MiB VMEM): tile HW, one batch row/step.
    tHW = 1
    for d in range(8, max_rows + 1, 8):   # prefer multiple-of-8 spatial tiles
        if HW % d == 0:
            tHW = d
    if tHW == 1:                          # no aligned divisor: fall back to full HW
        tHW = HW
    return 1, tHW


def simple_fusion(visual_feat, lang_feat, p, *, compute_dtype=jnp.bfloat16):
    """visual_feat: [B, Cin, H, W] (NCHW), lang_feat: [B, 1, Dt] -> [B, Cproj, H, W]."""
    B, Cin, H, W = visual_feat.shape
    Dt = lang_feat.shape[-1]
    Cproj = p["w_conv"].shape[1]
    HW = H * W
    Bt, tHW = _pick_tiles(B, HW)

    # --- hoisted language branch: Linear + BN1d + LeakyReLU, then fold fus_scale
    lang = lang_feat.reshape(B, Dt).astype(jnp.float32)
    lp = _leaky(lang @ p["w_lang"] * p["lang_scale"] + p["lang_shift"])   # (B, Cproj)
    lp_fus = (lp * p["fus_scale"]).reshape(B, 1, Cproj).astype(jnp.float32)

    # Fold the conv-BN per-channel scale into the conv weight (linear op).
    w_conv = (p["w_conv"] * p["conv_scale"][None, :]).astype(compute_dtype)

    # Shared per-channel shift vectors packed into one slab (one ref, one DMA).
    cvec = jnp.stack([p["conv_shift"], p["fus_shift"]], axis=0).astype(jnp.float32)

    # NCHW -> channels-last [B, HW, Cin]; keeps output stores lane-dense
    # (Cproj is a multiple of 128) even when HW < 128.
    # TODO(synk): for HW >= 128 an NCHW-native kernel ((Cproj,Cin)@(Cin,HW)) would
    #             eliminate both wrapper transposes.
    vis = jnp.transpose(visual_feat, (0, 2, 3, 1)).reshape(B, HW, Cin)
    vis = vis.astype(compute_dtype)

    out = pl.pallas_call(
        simple_fusion_kernel,
        out_shape=jax.ShapeDtypeStruct((B, HW, Cproj), jnp.float32),
        grid_spec=pltpu.PrefetchScalarGridSpec(
            num_scalar_prefetch=0,
            grid=(B // Bt, HW // tHW),
            in_specs=[
                pl.BlockSpec((Bt, tHW, Cin), lambda bi, hi: (bi, hi, 0)),  # visual
                pl.BlockSpec((Cin, Cproj), lambda bi, hi: (0, 0)),         # conv weight (scaled)
                pl.BlockSpec((2, Cproj), lambda bi, hi: (0, 0)),           # shift slab
                pl.BlockSpec((Bt, 1, Cproj), lambda bi, hi: (bi, 0, 0)),   # lang * fus_scale
            ],
            out_specs=pl.BlockSpec((Bt, tHW, Cproj), lambda bi, hi: (bi, hi, 0)),
        ),
        compiler_params=pltpu.CompilerParams(
            dimension_semantics=("parallel", "parallel"),
            vmem_limit_bytes=32 * 1024 * 1024,
        ),
    )(vis, w_conv, cvec, lp_fus)

    return jnp.transpose(out.reshape(B, H, W, Cproj), (0, 3, 1, 2))


def make_params(key, visual_dim, text_dim, proj_dim):
    """Deterministic synthetic parameters; BN layers folded to (scale, shift)."""
    ks = jax.random.split(key, 16)

    def bn_fold(kg, kb, km, kv, n):
        gamma = 1.0 + 0.1 * jax.random.normal(kg, (n,), jnp.float32)
        beta = 0.1 * jax.random.normal(kb, (n,), jnp.float32)
        mean = 0.05 * jax.random.normal(km, (n,), jnp.float32)
        var = jnp.abs(1.0 + 0.1 * jax.random.normal(kv, (n,), jnp.float32))
        scale = gamma / jnp.sqrt(var + BN_EPS)
        shift = beta - scale * mean
        return scale, shift

    # mapping_visu: Conv2d(visual_dim, proj_dim, 1, bias=False) + BN2d
    w_conv = 0.02 * jax.random.normal(ks[0], (visual_dim, proj_dim), jnp.float32)
    conv_scale, conv_shift = bn_fold(ks[1], ks[2], ks[3], ks[4], proj_dim)

    # lang_proj: Linear(text_dim, proj_dim) + BN1d
    w_lang = 0.02 * jax.random.normal(ks[5], (text_dim, proj_dim), jnp.float32)
    b_lin = 0.1 * jax.random.normal(ks[6], (proj_dim,), jnp.float32)
    s1d, sh1d = bn_fold(ks[7], ks[8], ks[9], ks[10], proj_dim)
    lang_scale = s1d
    lang_shift = s1d * b_lin + sh1d   # fold linear bias through BN1d

    # fusion: BN2d
    fus_scale, fus_shift = bn_fold(ks[11], ks[12], ks[13], ks[14], proj_dim)

    return dict(
        w_conv=w_conv, conv_scale=conv_scale, conv_shift=conv_shift,
        w_lang=w_lang, lang_scale=lang_scale, lang_shift=lang_shift,
        fus_scale=fus_scale, fus_shift=fus_shift,
    )


def reference(visual_feat, lang_feat, p):
    """Pure-JAX f32 reference of the PyTorch forward (inference-mode BN)."""
    vis = jnp.transpose(visual_feat, (0, 2, 3, 1))                    # B,H,W,Cin
    vp = jnp.einsum("bhwc,cd->bhwd", vis, p["w_conv"])
    vp = _leaky(vp * p["conv_scale"] + p["conv_shift"])
    lang = lang_feat[:, 0, :]
    lp = _leaky(lang @ p["w_lang"] * p["lang_scale"] + p["lang_shift"])
    f = vp * lp[:, None, None, :]
    f = _leaky(f * p["fus_scale"] + p["fus_shift"])
    return jnp.transpose(f, (0, 3, 1, 2))


if __name__ == "__main__":
    B, H, W = 2, 8, 8
    visual_dim, text_dim, proj_dim = 256, 128, 256

    key = jax.random.PRNGKey(0)
    k_vis, k_lang, k_par = jax.random.split(key, 3)
    visual_feat = jax.random.normal(k_vis, (B, visual_dim, H, W), jnp.float32)
    lang_feat = jax.random.normal(k_lang, (B, 1, text_dim), jnp.float32)
    params = make_params(k_par, visual_dim, text_dim, proj_dim)

    out = simple_fusion(visual_feat, lang_feat, params)
    out = jax.block_until_ready(out)

    ref = reference(visual_feat, lang_feat, params)
    assert out.shape == (B, proj_dim, H, W)
    # bf16 matmul inputs (f32 accumulation) -> loosened tolerance vs f32 reference.
    assert jnp.allclose(out, ref, atol=3e-2, rtol=3e-2), "mismatch vs JAX reference"

    print("KERNEL_OK")
</pallas_src>

<mosaic_0001>
module attributes {stable_mosaic.version = 11 : i64} {
  func.func @simple_fusion_kernel(%arg0: i32, %arg1: i32, %arg2: memref<2x64x256xbf16, #tpu.memory_space<vmem>>, %arg3: memref<256x256xbf16, #tpu.memory_space<vmem>>, %arg4: memref<2x256xf32, #tpu.memory_space<vmem>>, %arg5: memref<2x1x256xf32, #tpu.memory_space<vmem>>, %arg6: memref<2x64x256xf32, #tpu.memory_space<vmem>>) attributes {dimension_semantics = [#tpu.dimension_semantics<parallel>, #tpu.dimension_semantics<parallel>], iteration_bounds = array<i64: 1, 1>, scalar_prefetch = 0 : i64, scratch_operands = 0 : i64, tpu.core_type = #tpu.core_type<tc>, window_params = [{transform_indices = @transform_0, window_bounds = array<i64: 2, 64, 256>}, {pipeline_mode = #tpu.pipeline_mode<synchronous>, transform_indices = @transform_1, window_bounds = array<i64: 256, 256>}, {pipeline_mode = #tpu.pipeline_mode<synchronous>, transform_indices = @transform_2, window_bounds = array<i64: 2, 256>}, {transform_indices = @transform_3, window_bounds = array<i64: 2, 1, 256>}, {transform_indices = @transform_4, window_bounds = array<i64: 2, 64, 256>}]} {
    %c0 = arith.constant 0 : index
    %c0_0 = arith.constant 0 : index
    %c0_1 = arith.constant 0 : index
    %0 = vector.load %arg2[%c0, %c0_0, %c0_1] : memref<2x64x256xbf16, #tpu.memory_space<vmem>>, vector<2x64x256xbf16>
    %1 = vector.shape_cast %0 : vector<2x64x256xbf16> to vector<128x256xbf16>
    %c0_2 = arith.constant 0 : index
    %c0_3 = arith.constant 0 : index
    %2 = vector.load %arg3[%c0_2, %c0_3] : memref<256x256xbf16, #tpu.memory_space<vmem>>, vector<256x256xbf16>
    %cst = arith.constant dense<0.000000e+00> : vector<128x256xf32>
    %3 = tpu.matmul %1, %2, %cst {dimension_numbers = #tpu.dot_dimension_numbers<[1], [0], [0], [1], [0, 0, 1, 1], [], []>} : vector<128x256xbf16>, vector<256x256xbf16>, vector<128x256xf32> -> vector<128x256xf32>
    %c0_4 = arith.constant 0 : index
    %c0_5 = arith.constant 0 : index
    %4 = vector.load %arg4[%c0_4, %c0_5] : memref<2x256xf32, #tpu.memory_space<vmem>>, vector<1x256xf32>
    %5 = vector.broadcast %4 : vector<1x256xf32> to vector<128x256xf32>
    %6 = arith.addf %3, %5 : vector<128x256xf32>
    %cst_6 = arith.constant 1.000000e-01 : f32
    %7 = vector.broadcast %cst_6 : f32 to vector<128x256xf32>
    %8 = arith.mulf %7, %6 : vector<128x256xf32>
    %9 = arith.maximumf %6, %8 : vector<128x256xf32>
    %10 = vector.shape_cast %9 : vector<128x256xf32> to vector<2x64x256xf32>
    %c0_7 = arith.constant 0 : index
    %c0_8 = arith.constant 0 : index
    %c0_9 = arith.constant 0 : index
    %11 = vector.load %arg5[%c0_7, %c0_8, %c0_9] : memref<2x1x256xf32, #tpu.memory_space<vmem>>, vector<2x1x256xf32>
    %12 = vector.broadcast %11 : vector<2x1x256xf32> to vector<2x64x256xf32>
    %13 = arith.mulf %10, %12 : vector<2x64x256xf32>
    %c1 = arith.constant 1 : index
    %c0_10 = arith.constant 0 : index
    %14 = vector.load %arg4[%c1, %c0_10] : memref<2x256xf32, #tpu.memory_space<vmem>>, vector<1x256xf32>
    %15 = vector.shape_cast %14 : vector<1x256xf32> to vector<1x1x256xf32>
    %16 = vector.broadcast %15 : vector<1x1x256xf32> to vector<2x64x256xf32>
    %17 = arith.addf %13, %16 : vector<2x64x256xf32>
    %cst_11 = arith.constant 1.000000e-01 : f32
    %18 = vector.broadcast %cst_11 : f32 to vector<2x64x256xf32>
    %19 = arith.mulf %18, %17 : vector<2x64x256xf32>
    %20 = arith.maximumf %17, %19 : vector<2x64x256xf32>
    %c0_12 = arith.constant 0 : index
    %c0_13 = arith.constant 0 : index
    %c0_14 = arith.constant 0 : index
    %21 = vector.load %arg6[%c0_12, %c0_13, %c0_14] : memref<2x64x256xf32, #tpu.memory_space<vmem>>, vector<2x64x256xf32>
    tpu.vector_store %arg6[%c0_12, %c0_13, %c0_14], %20 {strides = array<i32>} : memref<2x64x256xf32, #tpu.memory_space<vmem>>, vector<2x64x256xf32>,
    return
  }
  func.func @transform_0(%arg0: i32, %arg1: i32) -> (i32, i32, i32) {
    %c0_i32 = arith.constant 0 : i32
    %c0_i32_0 = arith.constant 0 : i32
    return %arg0, %arg1, %c0_i32 : i32, i32, i32
  }
  func.func @transform_1(%arg0: i32, %arg1: i32) -> (i32, i32) {
    %c0_i32 = arith.constant 0 : i32
    %c0_i32_0 = arith.constant 0 : i32
    %c0_i32_1 = arith.constant 0 : i32
    return %c0_i32, %c0_i32_0 : i32, i32
  }
  func.func @transform_2(%arg0: i32, %arg1: i32) -> (i32, i32) {
    %c0_i32 = arith.constant 0 : i32
    %c0_i32_0 = arith.constant 0 : i32
    %c0_i32_1 = arith.constant 0 : i32
    return %c0_i32, %c0_i32_0 : i32, i32
  }
  func.func @transform_3(%arg0: i32, %arg1: i32) -> (i32, i32, i32) {
    %c0_i32 = arith.constant 0 : i32
    %c0_i32_0 = arith.constant 0 : i32
    %c0_i32_1 = arith.constant 0 : i32
    return %arg0, %c0_i32, %c0_i32_0 : i32, i32, i32
  }
  func.func @transform_4(%arg0: i32, %arg1: i32) -> (i32, i32, i32) {
    %c0_i32 = arith.constant 0 : i32
    %c0_i32_0 = arith.constant 0 : i32
    return %arg0, %arg1, %c0_i32 : i32, i32, i32
  }
}

</mosaic_0001>

<llo_original>
// kernel: tpu_custom_call.1
$region0: #{tpu_custom_call.1}
  #allocation0 [shape = 'u32[]', space=smem, size = 0x4, offset = 0x4, fixed_abs, tag = 'smem constant byte address 0x4 - core index']
  #allocation1 [shape = 'u32[144,128]{1,0:T(1,128)}', space=vmem, size = 0x12000, scoped, tag = 'internal scratch']
  %s0 = inlined_call_operand.hbm [shape: bf16[2,64,256], index: 0, kind: input, shape index: {}]
  %s1 = inlined_call_operand.hbm [shape: bf16[256,256], index: 1, kind: input, shape index: {}]
  %s2 = inlined_call_operand.hbm [shape: f32[2,256], index: 2, kind: input, shape index: {}]
  %s3 = inlined_call_operand.vmem [shape: f32[2,1,256], index: 3, kind: input, shape index: {}]
  %s4 = inlined_call_operand.hbm [shape: f32[2,64,256], index: 4, kind: output, shape index: {}]
  %s5 = sld [smem:[#allocation0]]
  $region38: #{tpu_custom_call.1} parent=0
    _
  %s7 = ssub.s32 1, %s5
  %s8 = scalar_select 0, %s7, %s5
  $region1: #{tpu_custom_call.1} parent=0
    #allocation2 [shape = 'u8[65536]{0}', space=vmem, size = 0x10000, scoped, tag = 'input window, operand 0, single buffered']
    #allocation3 [shape = 's32[1]{0}', space=sflag, size = 0x4, scoped, tag = 'scoped memory for tpu_custom_call.1']
    #allocation4 [shape = 's32[1]{0}', space=sflag, size = 0x4, scoped, tag = 'scoped memory for tpu_custom_call.1']
    #allocation5 [shape = 'u8[131072]{0}', space=vmem, size = 0x20000, scoped, tag = 'input window, operand 1, single buffered']
    #allocation6 [shape = 's32[1]{0}', space=sflag, size = 0x4, scoped, tag = 'scoped memory for tpu_custom_call.1']
    #allocation7 [shape = 'u8[2048]{0}', space=vmem, size = 0x800, scoped, tag = 'input window, operand 2, single buffered']
    #allocation8 [shape = 'u8[131072]{0}', space=vmem, size = 0x20000, scoped, tag = 'output window, operand 0, single buffered']
    %9 = vsyncpa [#allocation3], 0
    %10 = vsyncpa [#allocation6], 0
    %11 = vsyncpa [#allocation4], 0
    // Predicated region
    $region2: #{tpu_custom_call.1} parent=1 // pred_check
      _
    $region3: #{tpu_custom_call.1} parent=1 // pred_check_branch
      %13 = sbr.rel (0) target = $region5
    $region4: #{tpu_custom_call.1} parent=1 // pred_region
      %s15 = ssub.s32 2048, 2048
      %16 = vsyncadd [#allocation3], %s15
      %s17 = sshll.u32 [#allocation2], 4
      %s18 = int_to_ptr.vmem [resolvable:$true] %s17
      %23 = dma.hbm_to_vmem [thread:$0]  %s0, 2048, %s18, [#allocation3], 128, 128, 8
    $region5: #{tpu_custom_call.1} parent=1 // pred_fallthru
      _
    // Predicated region
    $region6: #{tpu_custom_call.1} parent=1 // pred_check
      _
    $region7: #{tpu_custom_call.1} parent=1 // pred_check_branch
      %25 = sbr.rel (0) target = $region9
    $region8: #{tpu_custom_call.1} parent=1 // pred_region
      %s27 = ssub.s32 4096, 4096
      %28 = vsyncadd [#allocation6], %s27
      %s29 = sshll.u32 [#allocation5], 4
      %s30 = int_to_ptr.vmem [resolvable:$true] %s29
      %35 = dma.hbm_to_vmem [thread:$0]  %s1, 4096, %s30, [#allocation6], 128, 128, 8
    $region9: #{tpu_custom_call.1} parent=1 // pred_fallthru
      _
    // Predicated region
    $region10: #{tpu_custom_call.1} parent=1 // pred_check
      _
    $region11: #{tpu_custom_call.1} parent=1 // pred_check_branch
      %37 = sbr.rel (0) target = $region13
    $region12: #{tpu_custom_call.1} parent=1 // pred_region
      %s39 = ssub.s32 64, 64
      %40 = vsyncadd [#allocation6], %s39
      %s42 = sshll.u32 [#allocation7], 4
      %s43 = int_to_ptr.vmem [resolvable:$true] %s42
      %45 = dma.hbm_to_vmem [thread:$0]  %s2, 64, %s43, [#allocation6]
    $region13: #{tpu_custom_call.1} parent=1 // pred_fallthru
      _
    // Predicated region
    $region14: #{tpu_custom_call.1} parent=1 // pred_check
      _
    $region15: #{tpu_custom_call.1} parent=1 // pred_check_branch
      %47 = sbr.rel (0) target = $region17
    $region16: #{tpu_custom_call.1} parent=1 // pred_region
      _
    $region17: #{tpu_custom_call.1} parent=1 // pred_fallthru
      _
    // Predicated region
    $region18: #{tpu_custom_call.1} parent=1 // pred_check
      _
    $region19: #{tpu_custom_call.1} parent=1 // pred_check_branch
      %49 = sbr.rel (0) target = $region21
    $region20: #{tpu_custom_call.1} parent=1 // pred_region
      %50 = dma.done [#allocation3], 2048
    $region21: #{tpu_custom_call.1} parent=1 // pred_fallthru
      _
    // Predicated region
    $region22: #{tpu_custom_call.1} parent=1 // pred_check
      _
    $region23: #{tpu_custom_call.1} parent=1 // pred_check_branch
      %52 = sbr.rel (0) target = $region25
    $region24: #{tpu_custom_call.1} parent=1 // pred_region
      %53 = dma.done [#allocation6], 4096
    $region25: #{tpu_custom_call.1} parent=1 // pred_fallthru
      _
    // Predicated region
    $region26: #{tpu_custom_call.1} parent=1 // pred_check
      _
    $region27: #{tpu_custom_call.1} parent=1 // pred_check_branch
      %55 = sbr.rel (0) target = $region29
    $region28: #{tpu_custom_call.1} parent=1 // pred_region
      %56 = dma.done [#allocation6], 64
    $region29: #{tpu_custom_call.1} parent=1 // pred_fallthru
      _
    %v57 = vld [vmem:[#allocation2] sm:$0xff]
    %v58 = vld [vmem:[#allocation2 + $0x8] sm:$0xff]
    %v59 = vld [vmem:[#allocation2 + $0x10] sm:$0xff]
    %v60 = vld [vmem:[#allocation2 + $0x18] sm:$0xff]
    %v61 = vld [vmem:[#allocation2 + $0x20] sm:$0xff]
    %v62 = vld [vmem:[#allocation2 + $0x28] sm:$0xff]
    %v63 = vld [vmem:[#allocation2 + $0x30] sm:$0xff]
    %v64 = vld [vmem:[#allocation2 + $0x38] sm:$0xff]
    %v65 = vld [vmem:[#allocation2 + $0x40] sm:$0xff]
    %v66 = vld [vmem:[#allocation2 + $0x48] sm:$0xff]
    %v67 = vld [vmem:[#allocation2 + $0x50] sm:$0xff]
    %v68 = vld [vmem:[#allocation2 + $0x58] sm:$0xff]
    %v69 = vld [vmem:[#allocation2 + $0x60] sm:$0xff]
    %v70 = vld [vmem:[#allocation2 + $0x68] sm:$0xff]
    %v71 = vld [vmem:[#allocation2 + $0x70] sm:$0xff]
    %v72 = vld [vmem:[#allocation2 + $0x78] sm:$0xff]
    %v73 = vld [vmem:[#allocation5] sm:$0xff]
    %v74 = vld [vmem:[#allocation5 + $0x8] sm:$0xff]
    %v75 = vld [vmem:[#allocation5 + $0x10] sm:$0xff]
    %v76 = vld [vmem:[#allocation5 + $0x18] sm:$0xff]
    %v77 = vld [vmem:[#allocation5 + $0x20] sm:$0xff]
    %v78 = vld [vmem:[#allocation5 + $0x28] sm:$0xff]
    %v79 = vld [vmem:[#allocation5 + $0x30] sm:$0xff]
    %v80 = vld [vmem:[#allocation5 + $0x38] sm:$0xff]
    %v81 = vld [vmem:[#allocation5 + $0x40] sm:$0xff]
    %v82 = vld [vmem:[#allocation5 + $0x48] sm:$0xff]
    %v83 = vld [vmem:[#allocation5 + $0x50] sm:$0xff]
    %v84 = vld [vmem:[#allocation5 + $0x58] sm:$0xff]
    %v85 = vld [vmem:[#allocation5 + $0x60] sm:$0xff]
    %v86 = vld [vmem:[#allocation5 + $0x68] sm:$0xff]
    %v87 = vld [vmem:[#allocation5 + $0x70] sm:$0xff]
    %v88 = vld [vmem:[#allocation5 + $0x78] sm:$0xff]
    %v89 = vld [vmem:[#allocation5 + $0x80] sm:$0xff]
    %v90 = vld [vmem:[#allocation5 + $0x88] sm:$0xff]
    %v91 = vld [vmem:[#allocation5 + $0x90] sm:$0xff]
    %v92 = vld [vmem:[#allocation5 + $0x98] sm:$0xff]
    %v93 = vld [vmem:[#allocation5 + $0xa0] sm:$0xff]
    %v94 = vld [vmem:[#allocation5 + $0xa8] sm:$0xff]
    %v95 = vld [vmem:[#allocation5 + $0xb0] sm:$0xff]
    %v96 = vld [vmem:[#allocation5 + $0xb8] sm:$0xff]
    %v97 = vld [vmem:[#allocation5 + $0xc0] sm:$0xff]
    %v98 = vld [vmem:[#allocation5 + $0xc8] sm:$0xff]
    %v99 = vld [vmem:[#allocation5 + $0xd0] sm:$0xff]
    %v100 = vld [vmem:[#allocation5 + $0xd8] sm:$0xff]
    %v101 = vld [vmem:[#allocation5 + $0xe0] sm:$0xff]
    %v102 = vld [vmem:[#allocation5 + $0xe8] sm:$0xff]
    %v103 = vld [vmem:[#allocation5 + $0xf0] sm:$0xff]
    %v104 = vld [vmem:[#allocation5 + $0xf8] sm:$0xff]
    %v105 = vld [vmem:[#allocation7] ss:$2 sm:$0x3]
    %v107 = vlaneseq
    %v108 = vshrl.u32 %v107, 7
    %v109 = vsub.s32 0, %v108
    %v110 = vrot.slane %v105, %v109
    %v111 = vlaneseq
    %v112 = vshrl.u32 %v111, 7
    %v113 = vsub.s32 1, %v112
    %v114 = vrot.slane %v105, %v113
    %v133 = vunpack.c.l.b16 %v57
    %v134 = vunpack.c.h.b16 %v57
    %v135 = vunpack.c.l.b16 %v58
    %v136 = vunpack.c.h.b16 %v58
    %v137 = vunpack.c.l.b16 %v59
    %v138 = vunpack.c.h.b16 %v59
    %v139 = vunpack.c.l.b16 %v60
    %v140 = vunpack.c.h.b16 %v60
    %v141 = vunpack.c.l.b16 %v61
    %v142 = vunpack.c.h.b16 %v61
    %v143 = vunpack.c.l.b16 %v62
    %v144 = vunpack.c.h.b16 %v62
    %v145 = vunpack.c.l.b16 %v63
    %v146 = vunpack.c.h.b16 %v63
    %v147 = vunpack.c.l.b16 %v64
    %v148 = vunpack.c.h.b16 %v64
    %v149 = vunpack.c.l.b16 %v65
    %v150 = vunpack.c.h.b16 %v65
    %v151 = vunpack.c.l.b16 %v66
    %v152 = vunpack.c.h.b16 %v66
    %v153 = vunpack.c.l.b16 %v67
    %v154 = vunpack.c.h.b16 %v67
    %v155 = vunpack.c.l.b16 %v68
    %v156 = vunpack.c.h.b16 %v68
    %v157 = vunpack.c.l.b16 %v69
    %v158 = vunpack.c.h.b16 %v69
    %v159 = vunpack.c.l.b16 %v70
    %v160 = vunpack.c.h.b16 %v70
    %v161 = vunpack.c.l.b16 %v71
    %v162 = vunpack.c.h.b16 %v71
    %v163 = vunpack.c.l.b16 %v72
    %v164 = vunpack.c.h.b16 %v72
    %v165 = vpack.c.b16 %v135, %v133
    %v166 = vpack.c.b16 %v136, %v134
    %v167 = vpack.c.b16 %v139, %v137
    %v168 = vpack.c.b16 %v140, %v138
    %v169 = vpack.c.b16 %v143, %v141
    %v170 = vpack.c.b16 %v144, %v142
    %v171 = vpack.c.b16 %v147, %v145
    %v172 = vpack.c.b16 %v148, %v146
    %v173 = vpack.c.b16 %v151, %v149
    %v174 = vpack.c.b16 %v152, %v150
    %v175 = vpack.c.b16 %v155, %v153
    %v176 = vpack.c.b16 %v156, %v154
    %v177 = vpack.c.b16 %v159, %v157
    %v178 = vpack.c.b16 %v160, %v158
    %v179 = vpack.c.b16 %v163, %v161
    %v180 = vpack.c.b16 %v164, %v162
    %v229 = vunpack.c.l.b16 %v73
    %v230 = vunpack.c.h.b16 %v73
    %v231 = vunpack.c.l.b16 %v74
    %v232 = vunpack.c.h.b16 %v74
    %v233 = vunpack.c.l.b16 %v75
    %v234 = vunpack.c.h.b16 %v75
    %v235 = vunpack.c.l.b16 %v76
    %v236 = vunpack.c.h.b16 %v76
    %v237 = vunpack.c.l.b16 %v77
    %v238 = vunpack.c.h.b16 %v77
    %v239 = vunpack.c.l.b16 %v78
    %v240 = vunpack.c.h.b16 %v78
    %v241 = vunpack.c.l.b16 %v79
    %v242 = vunpack.c.h.b16 %v79
    %v243 = vunpack.c.l.b16 %v80
    %v244 = vunpack.c.h.b16 %v80
    %v245 = vunpack.c.l.b16 %v81
    %v246 = vunpack.c.h.b16 %v81
    %v247 = vunpack.c.l.b16 %v82
    %v248 = vunpack.c.h.b16 %v82
    %v249 = vunpack.c.l.b16 %v83
    %v250 = vunpack.c.h.b16 %v83
    %v251 = vunpack.c.l.b16 %v84
    %v252 = vunpack.c.h.b16 %v84
    %v253 = vunpack.c.l.b16 %v85
    %v254 = vunpack.c.h.b16 %v85
    %v255 = vunpack.c.l.b16 %v86
    %v256 = vunpack.c.h.b16 %v86
    %v257 = vunpack.c.l.b16 %v87
    %v258 = vunpack.c.h.b16 %v87
    %v259 = vunpack.c.l.b16 %v88
    %v260 = vunpack.c.h.b16 %v88
    %v261 = vunpack.c.l.b16 %v89
    %v262 = vunpack.c.h.b16 %v89
    %v263 = vunpack.c.l.b16 %v90
    %v264 = vunpack.c.h.b16 %v90
    %v265 = vunpack.c.l.b16 %v91
    %v266 = vunpack.c.h.b16 %v91
    %v267 = vunpack.c.l.b16 %v92
    %v268 = vunpack.c.h.b16 %v92
    %v269 = vunpack.c.l.b16 %v93
    %v270 = vunpack.c.h.b16 %v93
    %v271 = vunpack.c.l.b16 %v94
    %v272 = vunpack.c.h.b16 %v94
    %v273 = vunpack.c.l.b16 %v95
    %v274 = vunpack.c.h.b16 %v95
    %v275 = vunpack.c.l.b16 %v96
    %v276 = vunpack.c.h.b16 %v96
    %v277 = vunpack.c.l.b16 %v97
    %v278 = vunpack.c.h.b16 %v97
    %v279 = vunpack.c.l.b16 %v98
    %v280 = vunpack.c.h.b16 %v98
    %v281 = vunpack.c.l.b16 %v99
    %v282 = vunpack.c.h.b16 %v99
    %v283 = vunpack.c.l.b16 %v100
    %v284 = vunpack.c.h.b16 %v100
    %v285 = vunpack.c.l.b16 %v101
    %v286 = vunpack.c.h.b16 %v101
    %v287 = vunpack.c.l.b16 %v102
    %v288 = vunpack.c.h.b16 %v102
    %v289 = vunpack.c.l.b16 %v103
    %v290 = vunpack.c.h.b16 %v103
    %v291 = vunpack.c.l.b16 %v104
    %v292 = vunpack.c.h.b16 %v104
    %v293 = vpack.c.b16 %v231, %v229
    %v294 = vpack.c.b16 %v232, %v230
    %v295 = vpack.c.b16 %v235, %v233
    %v296 = vpack.c.b16 %v236, %v234
    %v297 = vpack.c.b16 %v239, %v237
    %v298 = vpack.c.b16 %v240, %v238
    %v299 = vpack.c.b16 %v243, %v241
    %v300 = vpack.c.b16 %v244, %v242
    %v301 = vpack.c.b16 %v247, %v245
    %v302 = vpack.c.b16 %v248, %v246
    %v303 = vpack.c.b16 %v251, %v249
    %v304 = vpack.c.b16 %v252, %v250
    %v305 = vpack.c.b16 %v255, %v253
    %v306 = vpack.c.b16 %v256, %v254
    %v307 = vpack.c.b16 %v259, %v257
    %v308 = vpack.c.b16 %v260, %v258
    %v309 = vpack.c.b16 %v263, %v261
    %v310 = vpack.c.b16 %v264, %v262
    %v311 = vpack.c.b16 %v267, %v265
    %v312 = vpack.c.b16 %v268, %v266
    %v313 = vpack.c.b16 %v271, %v269
    %v314 = vpack.c.b16 %v272, %v270
    %v315 = vpack.c.b16 %v275, %v273
    %v316 = vpack.c.b16 %v276, %v274
    %v317 = vpack.c.b16 %v279, %v277
    %v318 = vpack.c.b16 %v280, %v278
    %v319 = vpack.c.b16 %v283, %v281
    %v320 = vpack.c.b16 %v284, %v282
    %v321 = vpack.c.b16 %v287, %v285
    %v322 = vpack.c.b16 %v288, %v286
    %v323 = vpack.c.b16 %v291, %v289
    %v324 = vpack.c.b16 %v292, %v290
    %357 = vmatprep.subr.bf16.mxu0 %v308
    %358 = vmatpush1.bf16.msra.mxu0 %v307
    %359 = vmatprep.subr.bf16.mxu0 %v306
    %360 = vmatpush1.bf16.msra.mxu0 %v305
    %361 = vmatprep.subr.bf16.mxu0 %v304
    %362 = vmatpush1.bf16.msra.mxu0 %v303
    %363 = vmatprep.subr.bf16.mxu0 %v302
    %364 = vmatpush1.bf16.msra.mxu0 %v301
    %365 = vmatprep.subr.bf16.mxu0 %v300
    %366 = vmatpush1.bf16.msra.mxu0 %v299
    %367 = vmatprep.subr.bf16.mxu0 %v298
    %368 = vmatpush1.bf16.msra.mxu0 %v297
    %369 = vmatprep.subr.bf16.mxu0 %v296
    %370 = vmatpush1.bf16.msra.mxu0 %v295
    %371 = vmatprep.subr.bf16.mxu0 %v294
    %372 = vmatpush1.bf16.msra.mxu0 %v293
    %373 = vmatprep.subr.bf16.mxu0 %v324
    %374 = vmatpush2.bf16.msra.mxu0 %v323
    %375 = vmatprep.subr.bf16.mxu0 %v322
    %376 = vmatpush2.bf16.msra.mxu0 %v321
    %377 = vmatprep.subr.bf16.mxu0 %v320
    %378 = vmatpush2.bf16.msra.mxu0 %v319
    %379 = vmatprep.subr.bf16.mxu0 %v318
    %380 = vmatpush2.bf16.msra.mxu0 %v317
    %381 = vmatprep.subr.bf16.mxu0 %v316
    %382 = vmatpush2.bf16.msra.mxu0 %v315
    %383 = vmatprep.subr.bf16.mxu0 %v314
    %384 = vmatpush2.bf16.msra.mxu0 %v313
    %385 = vmatprep.subr.bf16.mxu0 %v312
    %386 = vmatpush2.bf16.msra.mxu0 %v311
    %387 = vmatprep.subr.bf16.mxu0 %v310
    %388 = vmatpush2.bf16.msra.mxu0 %v309
    %389 = vmatprep.mubr.bf16.mxu0 %v166
    %390 = vmatmul.mubr.bf16.gmra.mxu0 %v165
    %v391 = vpop.f32.mrf.mxu0
    %v392 = vadd.f32 %v110, %v391
    %v393 = vpop.f32.mrf.mxu0
    %v394 = vadd.f32 %v114, %v393
    %v395 = vpop.f32.mrf.mxu0
    %v396 = vadd.f32 %v110, %v395
    %v397 = vpop.f32.mrf.mxu0
    %v398 = vadd.f32 %v114, %v397
    %399 = vmatprep.mubr.bf16.mxu0 %v168
    %400 = vmatmul.mubr.bf16.gmra.mxu0 %v167
    %v401 = vpop.f32.mrf.mxu0
    %v402 = vadd.f32 %v110, %v401
    %v403 = vpop.f32.mrf.mxu0
    %v404 = vadd.f32 %v114, %v403
    %v405 = vpop.f32.mrf.mxu0
    %v406 = vadd.f32 %v110, %v405
    %v407 = vpop.f32.mrf.mxu0
    %v408 = vadd.f32 %v114, %v407
    %409 = vmatprep.mubr.bf16.mxu0 %v170
    %410 = vmatmul.mubr.bf16.gmra.mxu0 %v169
    %v411 = vpop.f32.mrf.mxu0
    %v412 = vadd.f32 %v110, %v411
    %v413 = vpop.f32.mrf.mxu0
    %v414 = vadd.f32 %v114, %v413
    %v415 = vpop.f32.mrf.mxu0
    %v416 = vadd.f32 %v110, %v415
    %v417 = vpop.f32.mrf.mxu0
    %v418 = vadd.f32 %v114, %v417
    %419 = vmatprep.mubr.bf16.mxu0 %v172
    %420 = vmatmul.mubr.bf16.gmra.mxu0 %v171
    %v421 = vpop.f32.mrf.mxu0
    %v422 = vadd.f32 %v110, %v421
    %v423 = vpop.f32.mrf.mxu0
    %v424 = vadd.f32 %v114, %v423
    %v425 = vpop.f32.mrf.mxu0
    %v426 = vadd.f32 %v110, %v425
    %v427 = vpop.f32.mrf.mxu0
    %v428 = vadd.f32 %v114, %v427
    %429 = vmatprep.mubr.bf16.mxu0 %v174
    %430 = vmatmul.mubr.bf16.gmra.mxu0 %v173
    %v431 = vpop.f32.mrf.mxu0
    %v432 = vadd.f32 %v110, %v431
    %v433 = vpop.f32.mrf.mxu0
    %v434 = vadd.f32 %v114, %v433
    %v435 = vpop.f32.mrf.mxu0
    %v436 = vadd.f32 %v110, %v435
    %v437 = vpop.f32.mrf.mxu0
    %v438 = vadd.f32 %v114, %v437
    %439 = vmatprep.mubr.bf16.mxu0 %v176
    %440 = vmatmul.mubr.bf16.gmra.mxu0 %v175
    %v441 = vpop.f32.mrf.mxu0
    %v442 = vadd.f32 %v110, %v441
    %v443 = vpop.f32.mrf.mxu0
    %v444 = vadd.f32 %v114, %v443
    %v445 = vpop.f32.mrf.mxu0
    %v446 = vadd.f32 %v110, %v445
    %v447 = vpop.f32.mrf.mxu0
    %v448 = vadd.f32 %v114, %v447
    %449 = vmatprep.mubr.bf16.mxu0 %v178
    %450 = vmatmul.mubr.bf16.gmra.mxu0 %v177
    %v451 = vpop.f32.mrf.mxu0
    %v452 = vadd.f32 %v110, %v451
    %v453 = vpop.f32.mrf.mxu0
    %v454 = vadd.f32 %v114, %v453
    %v455 = vpop.f32.mrf.mxu0
    %v456 = vadd.f32 %v110, %v455
    %v457 = vpop.f32.mrf.mxu0
    %v458 = vadd.f32 %v114, %v457
    %459 = vmatprep.mubr.bf16.mxu0 %v180
    %460 = vmatmul.mubr.bf16.gmra.mxu0 %v179
    %v461 = vpop.f32.mrf.mxu0
    %v462 = vadd.f32 %v110, %v461
    %v463 = vpop.f32.mrf.mxu0
    %v464 = vadd.f32 %v114, %v463
    %v465 = vpop.f32.mrf.mxu0
    %v466 = vadd.f32 %v110, %v465
    %v467 = vpop.f32.mrf.mxu0
    %v468 = vadd.f32 %v114, %v467
    %469 = vdwg.mxu0
    %v470 = vmul.f32 %v392, 0.1
    %v471 = vmul.f32 %v394, 0.1
    %v472 = vmul.f32 %v396, 0.1
    %v473 = vmul.f32 %v398, 0.1
    %v474 = vmul.f32 %v402, 0.1
    %v475 = vmul.f32 %v404, 0.1
    %v476 = vmul.f32 %v406, 0.1
    %v477 = vmul.f32 %v408, 0.1
    %v478 = vmul.f32 %v412, 0.1
    %v479 = vmul.f32 %v414, 0.1
    %v480 = vmul.f32 %v416, 0.1
    %v481 = vmul.f32 %v418, 0.1
    %v482 = vmul.f32 %v422, 0.1
    %v483 = vmul.f32 %v424, 0.1
    %v484 = vmul.f32 %v426, 0.1
    %v485 = vmul.f32 %v428, 0.1
    %v486 = vmul.f32 %v432, 0.1
    %v487 = vmul.f32 %v434, 0.1
    %v488 = vmul.f32 %v436, 0.1
    %v489 = vmul.f32 %v438, 0.1
    %v490 = vmul.f32 %v442, 0.1
    %v491 = vmul.f32 %v444, 0.1
    %v492 = vmul.f32 %v446, 0.1
    %v493 = vmul.f32 %v448, 0.1
    %v494 = vmul.f32 %v452, 0.1
    %v495 = vmul.f32 %v454, 0.1
    %v496 = vmul.f32 %v456, 0.1
    %v497 = vmul.f32 %v458, 0.1
    %v498 = vmul.f32 %v462, 0.1
    %v499 = vmul.f32 %v464, 0.1
    %v500 = vmul.f32 %v466, 0.1
    %v501 = vmul.f32 %v468, 0.1
    %v502 = vmax.f32 %v392, %v470
    %v503 = vmax.f32 %v394, %v471
    %v504 = vmax.f32 %v396, %v472
    %v505 = vmax.f32 %v398, %v473
    %v506 = vmax.f32 %v402, %v474
    %v507 = vmax.f32 %v404, %v475
    %v508 = vmax.f32 %v406, %v476
    %v509 = vmax.f32 %v408, %v477
    %v510 = vmax.f32 %v412, %v478
    %v511 = vmax.f32 %v414, %v479
    %v512 = vmax.f32 %v416, %v480
    %v513 = vmax.f32 %v418, %v481
    %v514 = vmax.f32 %v422, %v482
    %v515 = vmax.f32 %v424, %v483
    %v516 = vmax.f32 %v426, %v484
    %v517 = vmax.f32 %v428, %v485
    %v518 = vmax.f32 %v432, %v486
    %v519 = vmax.f32 %v434, %v487
    %v520 = vmax.f32 %v436, %v488
    %v521 = vmax.f32 %v438, %v489
    %v522 = vmax.f32 %v442, %v490
    %v523 = vmax.f32 %v444, %v491
    %v524 = vmax.f32 %v446, %v492
    %v525 = vmax.f32 %v448, %v493
    %v526 = vmax.f32 %v452, %v494
    %v527 = vmax.f32 %v454, %v495
    %v528 = vmax.f32 %v456, %v496
    %v529 = vmax.f32 %v458, %v497
    %v530 = vmax.f32 %v462, %v498
    %v531 = vmax.f32 %v464, %v499
    %v532 = vmax.f32 %v466, %v500
    %v533 = vmax.f32 %v468, %v501
    %v534 = vld [vmem:[%s3] sm:$0x3]
    %v535 = vld [vmem:[%s3 + $0x2] sm:$0x3]
    %v538 = vlaneseq
    %v539 = vshrl.u32 %v538, 7
    %v540 = vsub.s32 0, %v539
    %v541 = vrot.slane %v534, %v540
    %v542 = vlaneseq
    %v543 = vshrl.u32 %v542, 7
    %v544 = vsub.s32 1, %v543
    %v545 = vrot.slane %v534, %v544
    %v546 = vlaneseq
    %v547 = vshrl.u32 %v546, 7
    %v548 = vsub.s32 0, %v547
    %v549 = vrot.slane %v535, %v548
    %v550 = vlaneseq
    %v551 = vshrl.u32 %v550, 7
    %v552 = vsub.s32 1, %v551
    %v553 = vrot.slane %v535, %v552
    %v558 = vmul.f32 %v502, %v541
    %v559 = vmul.f32 %v503, %v545
    %v560 = vmul.f32 %v504, %v541
    %v561 = vmul.f32 %v505, %v545
    %v562 = vmul.f32 %v506, %v541
    %v563 = vmul.f32 %v507, %v545
    %v564 = vmul.f32 %v508, %v541
    %v565 = vmul.f32 %v509, %v545
    %v566 = vmul.f32 %v510, %v541
    %v567 = vmul.f32 %v511, %v545
    %v568 = vmul.f32 %v512, %v541
    %v569 = vmul.f32 %v513, %v545
    %v570 = vmul.f32 %v514, %v541
    %v571 = vmul.f32 %v515, %v545
    %v572 = vmul.f32 %v516, %v541
    %v573 = vmul.f32 %v517, %v545
    %v574 = vmul.f32 %v518, %v549
    %v575 = vmul.f32 %v519, %v553
    %v576 = vmul.f32 %v520, %v549
    %v577 = vmul.f32 %v521, %v553
    %v578 = vmul.f32 %v522, %v549
    %v579 = vmul.f32 %v523, %v553
    %v580 = vmul.f32 %v524, %v549
    %v581 = vmul.f32 %v525, %v553
    %v582 = vmul.f32 %v526, %v549
    %v583 = vmul.f32 %v527, %v553
    %v584 = vmul.f32 %v528, %v549
    %v585 = vmul.f32 %v529, %v553
    %v586 = vmul.f32 %v530, %v549
    %v587 = vmul.f32 %v531, %v553
    %v588 = vmul.f32 %v532, %v549
    %v589 = vmul.f32 %v533, %v553
    %s590 = scalar_lea.vmem [#allocation7], 1
    %v591 = vld [vmem:[%s590] ss:$2 sm:$0x3]
    %v593 = vlaneseq
    %v594 = vshrl.u32 %v593, 7
    %v595 = vsub.s32 0, %v594
    %v596 = vrot.slane %v591, %v595
    %v597 = vlaneseq
    %v598 = vshrl.u32 %v597, 7
    %v599 = vsub.s32 1, %v598
    %v600 = vrot.slane %v591, %v599
    %v603 = vadd.f32 %v558, %v596
    %v604 = vadd.f32 %v559, %v600
    %v605 = vadd.f32 %v560, %v596
    %v606 = vadd.f32 %v561, %v600
    %v607 = vadd.f32 %v562, %v596
    %v608 = vadd.f32 %v563, %v600
    %v609 = vadd.f32 %v564, %v596
    %v610 = vadd.f32 %v565, %v600
    %v611 = vadd.f32 %v566, %v596
    %v612 = vadd.f32 %v567, %v600
    %v613 = vadd.f32 %v568, %v596
    %v614 = vadd.f32 %v569, %v600
    %v615 = vadd.f32 %v570, %v596
    %v616 = vadd.f32 %v571, %v600
    %v617 = vadd.f32 %v572, %v596
    %v618 = vadd.f32 %v573, %v600
    %v619 = vadd.f32 %v574, %v596
    %v620 = vadd.f32 %v575, %v600
    %v621 = vadd.f32 %v576, %v596
    %v622 = vadd.f32 %v577, %v600
    %v623 = vadd.f32 %v578, %v596
    %v624 = vadd.f32 %v579, %v600
    %v625 = vadd.f32 %v580, %v596
    %v626 = vadd.f32 %v581, %v600
    %v627 = vadd.f32 %v582, %v596
    %v628 = vadd.f32 %v583, %v600
    %v629 = vadd.f32 %v584, %v596
    %v630 = vadd.f32 %v585, %v600
    %v631 = vadd.f32 %v586, %v596
    %v632 = vadd.f32 %v587, %v600
    %v633 = vadd.f32 %v588, %v596
    %v634 = vadd.f32 %v589, %v600
    %v635 = vmul.f32 %v603, 0.1
    %v636 = vmul.f32 %v604, 0.1
    %v637 = vmul.f32 %v605, 0.1
    %v638 = vmul.f32 %v606, 0.1
    %v639 = vmul.f32 %v607, 0.1
    %v640 = vmul.f32 %v608, 0.1
    %v641 = vmul.f32 %v609, 0.1
    %v642 = vmul.f32 %v610, 0.1
    %v643 = vmul.f32 %v611, 0.1
    %v644 = vmul.f32 %v612, 0.1
    %v645 = vmul.f32 %v613, 0.1
    %v646 = vmul.f32 %v614, 0.1
    %v647 = vmul.f32 %v615, 0.1
    %v648 = vmul.f32 %v616, 0.1
    %v649 = vmul.f32 %v617, 0.1
    %v650 = vmul.f32 %v618, 0.1
    %v651 = vmul.f32 %v619, 0.1
    %v652 = vmul.f32 %v620, 0.1
    %v653 = vmul.f32 %v621, 0.1
    %v654 = vmul.f32 %v622, 0.1
    %v655 = vmul.f32 %v623, 0.1
    %v656 = vmul.f32 %v624, 0.1
    %v657 = vmul.f32 %v625, 0.1
    %v658 = vmul.f32 %v626, 0.1
    %v659 = vmul.f32 %v627, 0.1
    %v660 = vmul.f32 %v628, 0.1
    %v661 = vmul.f32 %v629, 0.1
    %v662 = vmul.f32 %v630, 0.1
    %v663 = vmul.f32 %v631, 0.1
    %v664 = vmul.f32 %v632, 0.1
    %v665 = vmul.f32 %v633, 0.1
    %v666 = vmul.f32 %v634, 0.1
    %v667 = vmax.f32 %v603, %v635
    %v668 = vmax.f32 %v604, %v636
    %v669 = vmax.f32 %v605, %v637
    %v670 = vmax.f32 %v606, %v638
    %v671 = vmax.f32 %v607, %v639
    %v672 = vmax.f32 %v608, %v640
    %v673 = vmax.f32 %v609, %v641
    %v674 = vmax.f32 %v610, %v642
    %v675 = vmax.f32 %v611, %v643
    %v676 = vmax.f32 %v612, %v644
    %v677 = vmax.f32 %v613, %v645
    %v678 = vmax.f32 %v614, %v646
    %v679 = vmax.f32 %v615, %v647
    %v680 = vmax.f32 %v616, %v648
    %v681 = vmax.f32 %v617, %v649
    %v682 = vmax.f32 %v618, %v650
    %v683 = vmax.f32 %v619, %v651
    %v684 = vmax.f32 %v620, %v652
    %v685 = vmax.f32 %v621, %v653
    %v686 = vmax.f32 %v622, %v654
    %v687 = vmax.f32 %v623, %v655
    %v688 = vmax.f32 %v624, %v656
    %v689 = vmax.f32 %v625, %v657
    %v690 = vmax.f32 %v626, %v658
    %v691 = vmax.f32 %v627, %v659
    %v692 = vmax.f32 %v628, %v660
    %v693 = vmax.f32 %v629, %v661
    %v694 = vmax.f32 %v630, %v662
    %v695 = vmax.f32 %v631, %v663
    %v696 = vmax.f32 %v632, %v664
    %v697 = vmax.f32 %v633, %v665
    %v698 = vmax.f32 %v634, %v666
    %699 = vst [vmem:[#allocation8] sm:$0xff] %v667
    %700 = vst [vmem:[#allocation8 + $0x8] sm:$0xff] %v668
    %701 = vst [vmem:[#allocation8 + $0x10] sm:$0xff] %v669
    %702 = vst [vmem:[#allocation8 + $0x18] sm:$0xff] %v670
    %703 = vst [vmem:[#allocation8 + $0x20] sm:$0xff] %v671
    %704 = vst [vmem:[#allocation8 + $0x28] sm:$0xff] %v672
    %705 = vst [vmem:[#allocation8 + $0x30] sm:$0xff] %v673
    %706 = vst [vmem:[#allocation8 + $0x38] sm:$0xff] %v674
    %707 = vst [vmem:[#allocation8 + $0x40] sm:$0xff] %v675
    %708 = vst [vmem:[#allocation8 + $0x48] sm:$0xff] %v676
    %709 = vst [vmem:[#allocation8 + $0x50] sm:$0xff] %v677
    %710 = vst [vmem:[#allocation8 + $0x58] sm:$0xff] %v678
    %711 = vst [vmem:[#allocation8 + $0x60] sm:$0xff] %v679
    %712 = vst [vmem:[#allocation8 + $0x68] sm:$0xff] %v680
    %713 = vst [vmem:[#allocation8 + $0x70] sm:$0xff] %v681
    %714 = vst [vmem:[#allocation8 + $0x78] sm:$0xff] %v682
    %715 = vst [vmem:[#allocation8 + $0x80] sm:$0xff] %v683
    %716 = vst [vmem:[#allocation8 + $0x88] sm:$0xff] %v684
    %717 = vst [vmem:[#allocation8 + $0x90] sm:$0xff] %v685
    %718 = vst [vmem:[#allocation8 + $0x98] sm:$0xff] %v686
    %719 = vst [vmem:[#allocation8 + $0xa0] sm:$0xff] %v687
    %720 = vst [vmem:[#allocation8 + $0xa8] sm:$0xff] %v688
    %721 = vst [vmem:[#allocation8 + $0xb0] sm:$0xff] %v689
    %722 = vst [vmem:[#allocation8 + $0xb8] sm:$0xff] %v690
    %723 = vst [vmem:[#allocation8 + $0xc0] sm:$0xff] %v691
    %724 = vst [vmem:[#allocation8 + $0xc8] sm:$0xff] %v692
    %725 = vst [vmem:[#allocation8 + $0xd0] sm:$0xff] %v693
    %726 = vst [vmem:[#allocation8 + $0xd8] sm:$0xff] %v694
    %727 = vst [vmem:[#allocation8 + $0xe0] sm:$0xff] %v695
    %728 = vst [vmem:[#allocation8 + $0xe8] sm:$0xff] %v696
    %729 = vst [vmem:[#allocation8 + $0xf0] sm:$0xff] %v697
    %730 = vst [vmem:[#allocation8 + $0xf8] sm:$0xff] %v698
    // Predicated region
    $region30: #{tpu_custom_call.1} parent=1 // pred_check
      _
    $region31: #{tpu_custom_call.1} parent=1 // pred_check_branch
      %732 = sbr.rel (0) target = $region33
    $region32: #{tpu_custom_call.1} parent=1 // pred_region
      %s734 = ssub.s32 4096, 4096
      %735 = vsyncadd [#allocation4], %s734
      %s736 = sshll.u32 [#allocation8], 4
      %s737 = int_to_ptr.vmem [resolvable:$true] %s736
      %742 = dma.vmem_to_hbm [thread:$0]  %s737, 4096, %s4, [#allocation4], 256, 256, 16
    $region33: #{tpu_custom_call.1} parent=1 // pred_fallthru
      _
    // Predicated region
    $region34: #{tpu_custom_call.1} parent=1 // pred_check
      _
    $region35: #{tpu_custom_call.1} parent=1 // pred_check_branch
      %744 = sbr.rel (0) target = $region37
    $region36: #{tpu_custom_call.1} parent=1 // pred_region
      %745 = dma.done [#allocation4], 4096
    $region37: #{tpu_custom_call.1} parent=1 // pred_fallthru
      _
    %746 = vsyncpa [#allocation3], 1
    %747 = vsyncpa [#allocation6], 1
    %748 = vsyncpa [#allocation4], 1

</llo_original>
